<compile_context>
chip_gen: v7x
topology: tpu7x:2x2x1
jax: 0.10.0
libtpu: 0.0.40
codegen_flags: <defaults>
</compile_context>

<pallas_src>
import jax
import jax.numpy as jnp
from jax.experimental import pallas as pl
from jax.experimental.pallas import tpu as pltpu


LEAKY_SLOPE = 0.01  # nn.LeakyReLU default negative_slope

# LunarLander-like sizes: obs=8, hidden=[32, 32], actions=4
IN_SIZE = 8
H1 = 32
H2 = 32
OUT_SIZE = 4
PACK_W = 32  # lane width of the packed parameter slab (= max layer width)

# Static row offsets inside the packed parameter slab.
_W1_R0, _W1_R1 = 0, IN_SIZE                    # rows [0, 8)   : W1 (8, 32)
_B1_R = _W1_R1                                 # row 8         : b1 (1, 32)
_W2_R0, _W2_R1 = _B1_R + 1, _B1_R + 1 + H1     # rows [9, 41)  : W2 (32, 32)
_B2_R = _W2_R1                                 # row 41        : b2 (1, 32)
_W3_R0, _W3_R1 = _B2_R + 1, _B2_R + 1 + H2     # rows [42, 74) : W3 (32, 4) zero-padded to 32 cols
_B3_R = _W3_R1                                 # row 74        : b3 (1, 4) zero-padded to 32 cols
_PACK_ROWS = ((_B3_R + 1 + 7) // 8) * 8        # pad rows to a sublane multiple -> 80


def nn_pi_kernel(x_ref, p_ref, o_ref):
    """Full forward pass (3 matmuls + LeakyReLU + dim-0 softmax) in VMEM."""
    x = x_ref[...]                                   # (B, IN_SIZE), already f32

    # Static slices into the packed parameter slab.
    w1 = p_ref[_W1_R0:_W1_R1, :]                     # (8, 32)
    b1 = p_ref[_B1_R:_B1_R + 1, :]                   # (1, 32)
    w2 = p_ref[_W2_R0:_W2_R1, :]                     # (32, 32)
    b2 = p_ref[_B2_R:_B2_R + 1, :]                   # (1, 32)
    w3 = p_ref[_W3_R0:_W3_R1, :]                     # (32, 32), cols >= OUT_SIZE are zero
    b3 = p_ref[_B3_R:_B3_R + 1, :]                   # (1, 32),  cols >= OUT_SIZE are zero

    # layer 0 + LeakyReLU
    h = jnp.dot(x, w1, preferred_element_type=jnp.float32) + b1
    h = jnp.where(h > 0, h, LEAKY_SLOPE * h)

    # layer 1 + LeakyReLU
    h = jnp.dot(h, w2, preferred_element_type=jnp.float32) + b2
    h = jnp.where(h > 0, h, LEAKY_SLOPE * h)

    # output layer (computed at padded lane width 32)
    logits = jnp.dot(h, w3, preferred_element_type=jnp.float32) + b3  # (B, 32)

    # Softmax over dim=0 (rows), matching nn.Softmax(dim=0).  Columns are
    # independent under a dim-0 softmax, so the zero-padded columns beyond
    # OUT_SIZE cannot affect the first OUT_SIZE columns; we simply drop them.
    m = jnp.max(logits, axis=0, keepdims=True)
    e = jnp.exp(logits - m)
    denom = jnp.sum(e, axis=0, keepdims=True)
    probs = e * pl.reciprocal(denom, approx=False)   # EUP reciprocal, full precision
    o_ref[...] = probs[:, :OUT_SIZE].astype(o_ref.dtype)


def nn_pi_forward(x, packed_params):
    """Gridless pallas_call: whole x + one packed parameter slab resident in VMEM."""
    B = x.shape[0]
    return pl.pallas_call(
        nn_pi_kernel,
        out_shape=jax.ShapeDtypeStruct((B, OUT_SIZE), jnp.float32),
        in_specs=[
            pl.BlockSpec(memory_space=pltpu.MemorySpace.VMEM),
            pl.BlockSpec(memory_space=pltpu.MemorySpace.VMEM),
        ],
        out_specs=pl.BlockSpec(memory_space=pltpu.MemorySpace.VMEM),
    )(x, packed_params)


def init_params(key, in_size, hidden, out_size):
    """PyTorch-style uniform(-1/sqrt(fan_in), 1/sqrt(fan_in)) init.

    Weights stored transposed relative to torch ([in, out]) so the kernel does
    x @ W directly.  Biases kept as [1, out].
    """
    sizes = [in_size] + list(hidden) + [out_size]
    params = []
    for i in range(len(sizes) - 1):
        fan_in, fan_out = sizes[i], sizes[i + 1]
        key, kw, kb = jax.random.split(key, 3)
        bound = 1.0 / jnp.sqrt(jnp.float32(fan_in))
        w = jax.random.uniform(kw, (fan_in, fan_out), jnp.float32, -bound, bound)
        b = jax.random.uniform(kb, (1, fan_out), jnp.float32, -bound, bound)
        params.extend([w, b])
    return tuple(params)


def pack_params(params):
    """Pack (w1,b1,w2,b2,w3,b3) into a single padded [80, 32] f32 slab.

    Do this ONCE per parameter update and reuse the slab across forward calls
    so the per-call cost is just two DMAs (x + slab).
    """
    w1, b1, w2, b2, w3, b3 = params
    p = jnp.zeros((_PACK_ROWS, PACK_W), jnp.float32)
    p = p.at[_W1_R0:_W1_R1, :].set(w1)
    p = p.at[_B1_R, :].set(b1.reshape(-1))
    p = p.at[_W2_R0:_W2_R1, :].set(w2)
    p = p.at[_B2_R, :].set(b2.reshape(-1))
    p = p.at[_W3_R0:_W3_R1, :OUT_SIZE].set(w3)
    p = p.at[_B3_R, :OUT_SIZE].set(b3.reshape(-1))
    return p


def nn_pi_reference(x, params):
    """Pure-JAX reference for correctness check."""
    w1, b1, w2, b2, w3, b3 = params
    h = x @ w1 + b1
    h = jnp.where(h > 0, h, LEAKY_SLOPE * h)
    h = h @ w2 + b2
    h = jnp.where(h > 0, h, LEAKY_SLOPE * h)
    logits = h @ w3 + b3
    return jax.nn.softmax(logits, axis=0)  # dim=0 softmax, as in the module


if __name__ == "__main__":
    # LunarLander-like sizes: obs=8, hidden=[32, 32], actions=4, batch=2
    B = 2

    key = jax.random.PRNGKey(0)
    key, kx = jax.random.split(key)
    x = jax.random.normal(kx, (B, IN_SIZE), jnp.float32)
    params = init_params(key, IN_SIZE, (H1, H2), OUT_SIZE)

    packed = pack_params(params)            # one-time packing; reused per call
    packed = jax.block_until_ready(packed)

    out = nn_pi_forward(x, packed)
    out = jax.block_until_ready(out)

    ref = nn_pi_reference(x, params)
    assert out.shape == (B, OUT_SIZE)
    assert jnp.allclose(out, ref, atol=1e-5, rtol=1e-5), (out, ref)
    # softmax over dim=0: each column sums to 1 (matches nn.Softmax(dim=0))
    assert jnp.allclose(jnp.sum(out, axis=0), jnp.ones((OUT_SIZE,)), atol=1e-5)

    print("KERNEL_OK")
</pallas_src>

<mosaic_0001>
module attributes {stable_mosaic.version = 11 : i64} {
  func.func @nn_pi_kernel(%arg0: memref<2x8xf32, #tpu.memory_space<vmem>>, %arg1: memref<80x32xf32, #tpu.memory_space<vmem>>, %arg2: memref<2x4xf32, #tpu.memory_space<vmem>>) attributes {dimension_semantics = [], scalar_prefetch = 0 : i64, scratch_operands = 0 : i64, tpu.core_type = #tpu.core_type<tc>} {
    %c0 = arith.constant 0 : index
    %c0_0 = arith.constant 0 : index
    %0 = vector.load %arg0[%c0, %c0_0] : memref<2x8xf32, #tpu.memory_space<vmem>>, vector<2x8xf32>
    %c0_1 = arith.constant 0 : index
    %c0_2 = arith.constant 0 : index
    %1 = vector.load %arg1[%c0_1, %c0_2] : memref<80x32xf32, #tpu.memory_space<vmem>>, vector<8x32xf32>
    %c8 = arith.constant 8 : index
    %c0_3 = arith.constant 0 : index
    %2 = vector.load %arg1[%c8, %c0_3] : memref<80x32xf32, #tpu.memory_space<vmem>>, vector<1x32xf32>
    %c9 = arith.constant 9 : index
    %c0_4 = arith.constant 0 : index
    %3 = vector.load %arg1[%c9, %c0_4] : memref<80x32xf32, #tpu.memory_space<vmem>>, vector<32x32xf32>
    %c41 = arith.constant 41 : index
    %c0_5 = arith.constant 0 : index
    %4 = vector.load %arg1[%c41, %c0_5] : memref<80x32xf32, #tpu.memory_space<vmem>>, vector<1x32xf32>
    %c42 = arith.constant 42 : index
    %c0_6 = arith.constant 0 : index
    %5 = vector.load %arg1[%c42, %c0_6] : memref<80x32xf32, #tpu.memory_space<vmem>>, vector<32x32xf32>
    %c74 = arith.constant 74 : index
    %c0_7 = arith.constant 0 : index
    %6 = vector.load %arg1[%c74, %c0_7] : memref<80x32xf32, #tpu.memory_space<vmem>>, vector<1x32xf32>
    %cst = arith.constant dense<0.000000e+00> : vector<2x32xf32>
    %7 = tpu.matmul %0, %1, %cst {dimension_numbers = #tpu.dot_dimension_numbers<[1], [0], [0], [1], [0, 0, 1, 1], [], []>} : vector<2x8xf32>, vector<8x32xf32>, vector<2x32xf32> -> vector<2x32xf32>
    %8 = vector.broadcast %2 : vector<1x32xf32> to vector<2x32xf32>
    %9 = arith.addf %7, %8 : vector<2x32xf32>
    %cst_8 = arith.constant 0.000000e+00 : f32
    %10 = vector.broadcast %cst_8 : f32 to vector<2x32xf32>
    %11 = arith.cmpf ogt, %9, %10 : vector<2x32xf32>
    %cst_9 = arith.constant 0.00999999977 : f32
    %12 = vector.broadcast %cst_9 : f32 to vector<2x32xf32>
    %13 = arith.mulf %12, %9 : vector<2x32xf32>
    %14 = arith.select %11, %9, %13 : vector<2x32xi1>, vector<2x32xf32>
    %cst_10 = arith.constant dense<0.000000e+00> : vector<2x32xf32>
    %15 = tpu.matmul %14, %3, %cst_10 {dimension_numbers = #tpu.dot_dimension_numbers<[1], [0], [0], [1], [0, 0, 1, 1], [], []>} : vector<2x32xf32>, vector<32x32xf32>, vector<2x32xf32> -> vector<2x32xf32>
    %16 = vector.broadcast %4 : vector<1x32xf32> to vector<2x32xf32>
    %17 = arith.addf %15, %16 : vector<2x32xf32>
    %cst_11 = arith.constant 0.000000e+00 : f32
    %18 = vector.broadcast %cst_11 : f32 to vector<2x32xf32>
    %19 = arith.cmpf ogt, %17, %18 : vector<2x32xf32>
    %cst_12 = arith.constant 0.00999999977 : f32
    %20 = vector.broadcast %cst_12 : f32 to vector<2x32xf32>
    %21 = arith.mulf %20, %17 : vector<2x32xf32>
    %22 = arith.select %19, %17, %21 : vector<2x32xi1>, vector<2x32xf32>
    %cst_13 = arith.constant dense<0.000000e+00> : vector<2x32xf32>
    %23 = tpu.matmul %22, %5, %cst_13 {dimension_numbers = #tpu.dot_dimension_numbers<[1], [0], [0], [1], [0, 0, 1, 1], [], []>} : vector<2x32xf32>, vector<32x32xf32>, vector<2x32xf32> -> vector<2x32xf32>
    %24 = vector.broadcast %6 : vector<1x32xf32> to vector<2x32xf32>
    %25 = arith.addf %23, %24 : vector<2x32xf32>
    %cst_14 = arith.constant dense<0xFF800000> : vector<32xf32>
    %26 = vector.multi_reduction <maximumf>, %25, %cst_14 [0] : vector<2x32xf32> to vector<32xf32>
    %27 = vector.shape_cast %26 : vector<32xf32> to vector<1x32xf32>
    %28 = vector.broadcast %27 : vector<1x32xf32> to vector<2x32xf32>
    %29 = arith.subf %25, %28 : vector<2x32xf32>
    %30 = math.exp %29 : vector<2x32xf32>
    %cst_15 = arith.constant dense<0.000000e+00> : vector<32xf32>
    %31 = vector.multi_reduction <add>, %30, %cst_15 [0] : vector<2x32xf32> to vector<32xf32>
    %32 = vector.shape_cast %31 : vector<32xf32> to vector<1x32xf32>
    %33 = tpu.reciprocal %32 : vector<1x32xf32> -> vector<1x32xf32>
    %34 = vector.broadcast %33 : vector<1x32xf32> to vector<2x32xf32>
    %35 = arith.mulf %30, %34 : vector<2x32xf32>
    %36 = vector.extract_strided_slice %35 {offsets = [0, 0], sizes = [2, 4], strides = [1, 1]} : vector<2x32xf32> to vector<2x4xf32>
    %c0_16 = arith.constant 0 : index
    %c0_17 = arith.constant 0 : index
    %37 = vector.load %arg2[%c0_16, %c0_17] : memref<2x4xf32, #tpu.memory_space<vmem>>, vector<2x4xf32>
    tpu.vector_store %arg2[%c0_16, %c0_17], %36 {strides = array<i32>} : memref<2x4xf32, #tpu.memory_space<vmem>>, vector<2x4xf32>,
    return
  }
}

</mosaic_0001>

<llo_original>
// kernel: tpu_custom_call.1
$region0: #{tpu_custom_call.1}
  #allocation0 [shape = 'u32[]', space=smem, size = 0x4, offset = 0x4, fixed_abs, tag = 'smem constant byte address 0x4 - core index']
  #allocation1 [shape = 'u32[144,128]{1,0:T(1,128)}', space=vmem, size = 0x12000, scoped, tag = 'internal scratch']
  %s0 = inlined_call_operand.vmem [shape: f32[2,8], index: 0, kind: input, shape index: {}]
  %s1 = inlined_call_operand.vmem [shape: f32[80,32], index: 1, kind: input, shape index: {}]
  %s2 = inlined_call_operand.hbm [shape: f32[2,4], index: 2, kind: output, shape index: {}]
  %s3 = sld [smem:[#allocation0]]
  $region18: #{tpu_custom_call.1} parent=0
    _
  %s5 = ssub.s32 1, %s3
  %s6 = scalar_select 0, %s5, %s3
  $region1: #{tpu_custom_call.1} parent=0
    #allocation2 [shape = 'u8[1024]{0}', space=vmem, size = 0x400, scoped, tag = 'output window, operand 0, single buffered']
    #allocation3 [shape = 's32[1]{0}', space=sflag, size = 0x4, scoped, tag = 'scoped memory for tpu_custom_call.1']
    %7 = vsyncpa [#allocation3], 0
    // Predicated region
    $region2: #{tpu_custom_call.1} parent=1 // pred_check
      _
    $region3: #{tpu_custom_call.1} parent=1 // pred_check_branch
      %9 = sbr.rel (0) target = $region5
    $region4: #{tpu_custom_call.1} parent=1 // pred_region
      _
    $region5: #{tpu_custom_call.1} parent=1 // pred_fallthru
      _
    // Predicated region
    $region6: #{tpu_custom_call.1} parent=1 // pred_check
      _
    $region7: #{tpu_custom_call.1} parent=1 // pred_check_branch
      %11 = sbr.rel (0) target = $region9
    $region8: #{tpu_custom_call.1} parent=1 // pred_region
      _
    $region9: #{tpu_custom_call.1} parent=1 // pred_fallthru
      _
    %v12 = vld [vmem:[%s0] sm:$0x3]
    %v13 = vld [vmem:[%s1] sm:$0xff]
    %v14 = vld [vmem:[%s1 + $0x8] sm:$0x1]
    %v15 = vld [vmem:[%s1 + $0x9] sm:$0xff]
    %v16 = vld [vmem:[%s1 + $0x11] sm:$0xff]
    %v17 = vld [vmem:[%s1 + $0x19] sm:$0xff]
    %v18 = vld [vmem:[%s1 + $0x21] sm:$0xff]
    %v19 = vld [vmem:[%s1 + $0x29] sm:$0x1]
    %v20 = vld [vmem:[%s1 + $0x2a] sm:$0xff]
    %v21 = vld [vmem:[%s1 + $0x32] sm:$0xff]
    %v22 = vld [vmem:[%s1 + $0x3a] sm:$0xff]
    %v23 = vld [vmem:[%s1 + $0x42] sm:$0xff]
    %v24 = vld [vmem:[%s1 + $0x4a] sm:$0x1]
    %v25 = vlaneseq
    %v26 = vshrl.u32 %v25, 7
    %v27 = vsub.s32 0, %v26
    %v28 = vrot.slane %v14, %v27
    %vm29 = vcmask 64512
    %v31 = vsel %vm29, %v12, 0
    %33 = vmatprep.subr.mxu0 0.0
    %34 = vmatpush1.msra.mxu0 %v13
    %35 = vmatprep.subr.mxu0 0.0
    %36 = vmatpush1.msra.mxu0 0.0
    %37 = vmatprep.subr.mxu0 0.0
    %38 = vmatpush1.msra.mxu0 0.0
    %39 = vmatprep.subr.mxu0 0.0
    %40 = vmatpush1.msra.mxu0 0.0
    %41 = vmatprep.subr.mxu0 0.0
    %42 = vmatpush1.msra.mxu0 0.0
    %43 = vmatprep.subr.mxu0 0.0
    %44 = vmatpush1.msra.mxu0 0.0
    %45 = vmatprep.subr.mxu0 0.0
    %46 = vmatpush1.msra.mxu0 0.0
    %47 = vmatprep.subr.mxu0 0.0
    %48 = vmatpush1.msra.mxu0 0.0
    %49 = vmatprep.subr.mxu0 0.0
    %50 = vmatpush1.msra.mxu0 0.0
    %51 = vmatprep.subr.mxu0 0.0
    %52 = vmatpush1.msra.mxu0 0.0
    %53 = vmatprep.subr.mxu0 0.0
    %54 = vmatpush1.msra.mxu0 0.0
    %55 = vmatprep.subr.mxu0 0.0
    %56 = vmatpush1.msra.mxu0 0.0
    %57 = vmatprep.subr.mxu0 0.0
    %58 = vmatpush1.msra.mxu0 0.0
    %59 = vmatprep.subr.mxu0 0.0
    %60 = vmatpush1.msra.mxu0 0.0
    %61 = vmatprep.subr.mxu0 0.0
    %62 = vmatpush1.msra.mxu0 0.0
    %63 = vmatprep.subr.mxu0 0.0
    %64 = vmatpush1.msra.mxu0 0.0
    %65 = vmatprep.subr.mxu0 0.0
    %66 = vmatpush1.msra.mxu0 0.0
    %67 = vmatprep.subr.mxu0 0.0
    %68 = vmatpush1.msra.mxu0 0.0
    %69 = vmatprep.subr.mxu0 0.0
    %70 = vmatpush1.msra.mxu0 0.0
    %71 = vmatprep.subr.mxu0 0.0
    %72 = vmatpush1.msra.mxu0 0.0
    %73 = vmatprep.subr.mxu0 0.0
    %74 = vmatpush1.msra.mxu0 0.0
    %75 = vmatprep.subr.mxu0 0.0
    %76 = vmatpush1.msra.mxu0 0.0
    %77 = vmatprep.subr.mxu0 0.0
    %78 = vmatpush1.msra.mxu0 0.0
    %79 = vmatprep.subr.mxu0 0.0
    %80 = vmatpush1.msra.mxu0 0.0
    %81 = vmatprep.subr.mxu0 0.0
    %82 = vmatpush1.msra.mxu0 0.0
    %83 = vmatprep.subr.mxu0 0.0
    %84 = vmatpush1.msra.mxu0 0.0
    %85 = vmatprep.subr.mxu0 0.0
    %86 = vmatpush1.msra.mxu0 0.0
    %87 = vmatprep.subr.mxu0 0.0
    %88 = vmatpush1.msra.mxu0 0.0
    %89 = vmatprep.subr.mxu0 0.0
    %90 = vmatpush1.msra.mxu0 0.0
    %91 = vmatprep.subr.mxu0 0.0
    %92 = vmatpush1.msra.mxu0 0.0
    %93 = vmatprep.subr.mxu0 0.0
    %94 = vmatpush1.msra.mxu0 0.0
    %95 = vmatprep.subr.mxu0 0.0
    %96 = vmatpush1.msra.mxu0 0.0
    %97 = vmatprep.mubr.f32.mxu0 0.0
    %98 = vmatmul.mubr.f32.gmra.mrb[0].mxu0 %v31
    %v99 = vpop.f32.mrb[0].mxu0
    %v100 = vadd.f32 %v28, %v99
    %v101 = vpop.f32.mrb[0].mxu0
    %102 = vdwg.mxu0
    %vm103 = vcmp.gt.f32.partialorder %v100, 0.0
    %v104 = vmul.f32 %v100, 0.01
    %v105 = vsel %vm103, %v100, %v104
    %v106 = vlaneseq
    %v107 = vshrl.u32 %v106, 7
    %v108 = vsub.s32 0, %v107
    %v109 = vrot.slane %v19, %v108
    %vm110 = vcmask 261120
    %v112 = vsel %vm110, %v105, 0
    %114 = vmatprep.subr.mxu0 0.0
    %115 = vmatpush1.msra.mxu0 %v15
    %116 = vmatprep.subr.mxu0 0.0
    %117 = vmatpush1.msra.mxu0 %v16
    %118 = vmatprep.subr.mxu0 0.0
    %119 = vmatpush1.msra.mxu0 %v17
    %120 = vmatprep.subr.mxu0 0.0
    %121 = vmatpush1.msra.mxu0 %v18
    %122 = vmatprep.subr.mxu0 0.0
    %123 = vmatpush1.msra.mxu0 0.0
    %124 = vmatprep.subr.mxu0 0.0
    %125 = vmatpush1.msra.mxu0 0.0
    %126 = vmatprep.subr.mxu0 0.0
    %127 = vmatpush1.msra.mxu0 0.0
    %128 = vmatprep.subr.mxu0 0.0
    %129 = vmatpush1.msra.mxu0 0.0
    %130 = vmatprep.subr.mxu0 0.0
    %131 = vmatpush1.msra.mxu0 0.0
    %132 = vmatprep.subr.mxu0 0.0
    %133 = vmatpush1.msra.mxu0 0.0
    %134 = vmatprep.subr.mxu0 0.0
    %135 = vmatpush1.msra.mxu0 0.0
    %136 = vmatprep.subr.mxu0 0.0
    %137 = vmatpush1.msra.mxu0 0.0
    %138 = vmatprep.subr.mxu0 0.0
    %139 = vmatpush1.msra.mxu0 0.0
    %140 = vmatprep.subr.mxu0 0.0
    %141 = vmatpush1.msra.mxu0 0.0
    %142 = vmatprep.subr.mxu0 0.0
    %143 = vmatpush1.msra.mxu0 0.0
    %144 = vmatprep.subr.mxu0 0.0
    %145 = vmatpush1.msra.mxu0 0.0
    %146 = vmatprep.subr.mxu0 0.0
    %147 = vmatpush1.msra.mxu0 0.0
    %148 = vmatprep.subr.mxu0 0.0
    %149 = vmatpush1.msra.mxu0 0.0
    %150 = vmatprep.subr.mxu0 0.0
    %151 = vmatpush1.msra.mxu0 0.0
    %152 = vmatprep.subr.mxu0 0.0
    %153 = vmatpush1.msra.mxu0 0.0
    %154 = vmatprep.subr.mxu0 0.0
    %155 = vmatpush1.msra.mxu0 0.0
    %156 = vmatprep.subr.mxu0 0.0
    %157 = vmatpush1.msra.mxu0 0.0
    %158 = vmatprep.subr.mxu0 0.0
    %159 = vmatpush1.msra.mxu0 0.0
    %160 = vmatprep.subr.mxu0 0.0
    %161 = vmatpush1.msra.mxu0 0.0
    %162 = vmatprep.subr.mxu0 0.0
    %163 = vmatpush1.msra.mxu0 0.0
    %164 = vmatprep.subr.mxu0 0.0
    %165 = vmatpush1.msra.mxu0 0.0
    %166 = vmatprep.subr.mxu0 0.0
    %167 = vmatpush1.msra.mxu0 0.0
    %168 = vmatprep.subr.mxu0 0.0
    %169 = vmatpush1.msra.mxu0 0.0
    %170 = vmatprep.subr.mxu0 0.0
    %171 = vmatpush1.msra.mxu0 0.0
    %172 = vmatprep.subr.mxu0 0.0
    %173 = vmatpush1.msra.mxu0 0.0
    %174 = vmatprep.subr.mxu0 0.0
    %175 = vmatpush1.msra.mxu0 0.0
    %176 = vmatprep.subr.mxu0 0.0
    %177 = vmatpush1.msra.mxu0 0.0
    %178 = vmatprep.mubr.f32.mxu0 0.0
    %179 = vmatmul.mubr.f32.gmra.mrb[0].mxu0 %v112
    %v180 = vpop.f32.mrb[0].mxu0
    %v181 = vadd.f32 %v109, %v180
    %v182 = vpop.f32.mrb[0].mxu0
    %183 = vdwg.mxu0
    %vm184 = vcmp.gt.f32.partialorder %v181, 0.0
    %v185 = vmul.f32 %v181, 0.01
    %v186 = vsel %vm184, %v181, %v185
    %v187 = vlaneseq
    %v188 = vshrl.u32 %v187, 7
    %v189 = vsub.s32 0, %v188
    %v190 = vrot.slane %v24, %v189
    %v192 = vsel %vm110, %v186, 0
    %194 = vmatprep.subr.mxu0 0.0
    %195 = vmatpush1.msra.mxu0 %v20
    %196 = vmatprep.subr.mxu0 0.0
    %197 = vmatpush1.msra.mxu0 %v21
    %198 = vmatprep.subr.mxu0 0.0
    %199 = vmatpush1.msra.mxu0 %v22
    %200 = vmatprep.subr.mxu0 0.0
    %201 = vmatpush1.msra.mxu0 %v23
    %202 = vmatprep.subr.mxu0 0.0
    %203 = vmatpush1.msra.mxu0 0.0
    %204 = vmatprep.subr.mxu0 0.0
    %205 = vmatpush1.msra.mxu0 0.0
    %206 = vmatprep.subr.mxu0 0.0
    %207 = vmatpush1.msra.mxu0 0.0
    %208 = vmatprep.subr.mxu0 0.0
    %209 = vmatpush1.msra.mxu0 0.0
    %210 = vmatprep.subr.mxu0 0.0
    %211 = vmatpush1.msra.mxu0 0.0
    %212 = vmatprep.subr.mxu0 0.0
    %213 = vmatpush1.msra.mxu0 0.0
    %214 = vmatprep.subr.mxu0 0.0
    %215 = vmatpush1.msra.mxu0 0.0
    %216 = vmatprep.subr.mxu0 0.0
    %217 = vmatpush1.msra.mxu0 0.0
    %218 = vmatprep.subr.mxu0 0.0
    %219 = vmatpush1.msra.mxu0 0.0
    %220 = vmatprep.subr.mxu0 0.0
    %221 = vmatpush1.msra.mxu0 0.0
    %222 = vmatprep.subr.mxu0 0.0
    %223 = vmatpush1.msra.mxu0 0.0
    %224 = vmatprep.subr.mxu0 0.0
    %225 = vmatpush1.msra.mxu0 0.0
    %226 = vmatprep.subr.mxu0 0.0
    %227 = vmatpush1.msra.mxu0 0.0
    %228 = vmatprep.subr.mxu0 0.0
    %229 = vmatpush1.msra.mxu0 0.0
    %230 = vmatprep.subr.mxu0 0.0
    %231 = vmatpush1.msra.mxu0 0.0
    %232 = vmatprep.subr.mxu0 0.0
    %233 = vmatpush1.msra.mxu0 0.0
    %234 = vmatprep.subr.mxu0 0.0
    %235 = vmatpush1.msra.mxu0 0.0
    %236 = vmatprep.subr.mxu0 0.0
    %237 = vmatpush1.msra.mxu0 0.0
    %238 = vmatprep.subr.mxu0 0.0
    %239 = vmatpush1.msra.mxu0 0.0
    %240 = vmatprep.subr.mxu0 0.0
    %241 = vmatpush1.msra.mxu0 0.0
    %242 = vmatprep.subr.mxu0 0.0
    %243 = vmatpush1.msra.mxu0 0.0
    %244 = vmatprep.subr.mxu0 0.0
    %245 = vmatpush1.msra.mxu0 0.0
    %246 = vmatprep.subr.mxu0 0.0
    %247 = vmatpush1.msra.mxu0 0.0
    %248 = vmatprep.subr.mxu0 0.0
    %249 = vmatpush1.msra.mxu0 0.0
    %250 = vmatprep.subr.mxu0 0.0
    %251 = vmatpush1.msra.mxu0 0.0
    %252 = vmatprep.subr.mxu0 0.0
    %253 = vmatpush1.msra.mxu0 0.0
    %254 = vmatprep.subr.mxu0 0.0
    %255 = vmatpush1.msra.mxu0 0.0
    %256 = vmatprep.subr.mxu0 0.0
    %257 = vmatpush1.msra.mxu0 0.0
    %258 = vmatprep.mubr.f32.mxu0 0.0
    %259 = vmatmul.mubr.f32.gmra.mrb[0].mxu0 %v192
    %v260 = vpop.f32.mrb[0].mxu0
    %v261 = vadd.f32 %v190, %v260
    %v262 = vpop.f32.mrb[0].mxu0
    %263 = vdwg.mxu0
    %vm264 = vcmask 254976
    %v265 = vsel %vm264, %v261, -inf
    %v266 = vrot.slane %v265, 4
    %v267 = vmax.f32 %v265, %v266
    %v268 = vrot.slane %v267, 2
    %v269 = vmax.f32 %v267, %v268
    %v270 = vrot.slane %v269, 1
    %v271 = vmax.f32 %v269, %v270
    %v272 = vsub.f32 %v261, %v271
    %v273 = vmul.f32 %v272, 1.442695
    %v274 = vpow.pop %v273
    %v275 = vsel %vm264, %v274, 0.0
    %v276 = vrot.slane %v275, 4
    %v277 = vadd.f32 %v275, %v276
    %v278 = vrot.slane %v277, 2
    %v279 = vadd.f32 %v277, %v278
    %v280 = vrot.slane %v279, 1
    %v281 = vadd.f32 %v279, %v280
    %v282 = vrcp.pop %v281
    %v283 = vmul.f32 %v274, %v282
    %vm284 = vcmask 25600
    %285 = vst.msk [vmem:[#allocation2] sm:$0x3] %vm284, %v283
    // Predicated region
    $region10: #{tpu_custom_call.1} parent=1 // pred_check
      _
    $region11: #{tpu_custom_call.1} parent=1 // pred_check_branch
      %287 = sbr.rel (0) target = $region13
    $region12: #{tpu_custom_call.1} parent=1 // pred_region
      %s289 = ssub.s32 32, 32
      %290 = vsyncadd [#allocation3], %s289
      %s292 = sshll.u32 [#allocation2], 4
      %s293 = int_to_ptr.vmem [resolvable:$true] %s292
      %295 = dma.vmem_to_hbm [thread:$0]  %s293, 32, %s2, [#allocation3]
    $region13: #{tpu_custom_call.1} parent=1 // pred_fallthru
      _
    // Predicated region
    $region14: #{tpu_custom_call.1} parent=1 // pred_check
      _
    $region15: #{tpu_custom_call.1} parent=1 // pred_check_branch
      %297 = sbr.rel (0) target = $region17
    $region16: #{tpu_custom_call.1} parent=1 // pred_region
      %298 = dma.done [#allocation3], 32
    $region17: #{tpu_custom_call.1} parent=1 // pred_fallthru
      _
    %299 = vsyncpa [#allocation3], 1

</llo_original>
